<compile_context>
chip_gen: v5e
topology: v5e:2x2
jax: 0.10.0
libtpu: 0.0.40
codegen_flags: <defaults>
</compile_context>

<pallas_src>
import functools

import jax
import jax.numpy as jnp
from jax.experimental import pallas as pl
from jax.experimental.pallas import tpu as pltpu


def _round_up(n, m):
    return ((n + m - 1) // m) * m


def _softmax_mlp_kernel(*refs, n_layers):
    # refs = (x_ref, w0, b0, w1, b1, ..., w_last, b_last, out_ref)
    x_ref = refs[0]
    out_ref = refs[-1]
    wb = refs[1:-1]

    # bf16 operands into the MXU, f32 accumulation.
    h = x_ref[...].astype(jnp.bfloat16)

    for i in range(n_layers - 1):
        w = wb[2 * i][...]        # bf16 [in, out]
        b = wb[2 * i + 1][...]    # f32  [1, out]
        h32 = jnp.dot(h, w, preferred_element_type=jnp.float32) + b
        # leaky_relu (PyTorch default slope 0.01): mul + max, 2 VALU ops.
        h32 = jnp.maximum(h32, 0.01 * h32)
        h = h32.astype(jnp.bfloat16)

    w_last = wb[-2][...]
    b_last = wb[-1][...]
    logits = jnp.dot(h, w_last, preferred_element_type=jnp.float32) + b_last

    # Numerically-stable softmax over the last dim with an exact per-row divide so
    # rows sum to 1 to f32 precision.
    m = jnp.max(logits, axis=-1, keepdims=True)
    e = jnp.exp(logits - m)
    denom = jnp.sum(e, axis=-1, keepdims=True)
    inv = 1.0 / denom                          # one exact f32 divide per row
    out_ref[...] = (e * inv).astype(out_ref.dtype)


def _vmem_budget_bytes():
    # Physical VMEM per TensorCore (v5e/v6e: 128 MiB, v7x: 64 MiB); keep 1/4 headroom
    # for Mosaic-internal scratch.
    try:
        cap = pltpu.get_tpu_info().vmem_capacity_bytes
    except Exception:
        cap = 64 << 20  # conservative (v7x-sized) fallback
    return (cap * 3) // 4


def _estimate_vmem_bytes(tile, in_size, layer_dims, out_size, out_bytes, weight_bufs):
    w_bytes = sum(din * dout * 2 for din, dout in layer_dims) * weight_bufs   # bf16
    b_bytes = sum(dout * 4 for _, dout in layer_dims) * weight_bufs          # f32
    x_bytes = 2 * tile * in_size * 4             # double-buffered f32 input tile
    o_bytes = 2 * tile * out_size * out_bytes    # double-buffered output tile
    widest = max([dout for _, dout in layer_dims] + [in_size])
    act_bytes = 3 * tile * widest * 4            # a few live f32 intermediates
    return w_bytes + b_bytes + x_bytes + o_bytes + act_bytes


def softmax_mlp_forward(x, weights, biases, *, tile_m=512, out_dtype=jnp.float32):
    """x: [B, input_size]; weights[i]: [in_i, out_i]; biases[i]: [1, out_i].
    Returns softmax(MLP(x)) of shape [B, output_size] in `out_dtype`."""
    n_layers = len(weights)
    B, in_size = x.shape
    layer_dims = [(w.shape[0], w.shape[1]) for w in weights]
    out_size = layer_dims[-1][1]
    out_bytes = jnp.dtype(out_dtype).itemsize

    # bf16 MXU operands; biases stay f32 (added into the f32 accumulator).
    w_bf16 = [w.astype(jnp.bfloat16) for w in weights]
    b_f32 = [b.astype(jnp.float32).reshape(1, -1) for b in biases]

    # Batch tile: at least 16 rows (bf16 sublane pack); multiples of 128 once large.
    tile = min(tile_m, B)
    tile = _round_up(tile, 128) if tile >= 128 else _round_up(tile, 16)

    # Shrink the tile until resident weights + pipelined x/out tiles + intermediates
    # fit the generation's VMEM budget (v7x: 64 MiB total; v5e/v6e: 128 MiB).
    budget = _vmem_budget_bytes()
    while tile > 16 and _estimate_vmem_bytes(
            tile, in_size, layer_dims, out_size, out_bytes, 1) > budget:
        tile = max(16, tile // 2)
    # TODO(synk): if a single layer's bf16 weights alone exceed the VMEM budget, add a
    # K/N tiling grid axis instead of keeping all weights VMEM-resident.

    need = _estimate_vmem_bytes(tile, in_size, layer_dims, out_size, out_bytes, 1)
    vmem_limit = int(min(max(2 * need, 32 << 20), budget))

    grid = (pl.cdiv(B, tile),)

    args = [x]
    for w, b in zip(w_bf16, b_f32):
        args.append(w)
        args.append(b)

    flops = 2 * B * sum(din * dout for din, dout in layer_dims)
    bytes_accessed = (x.size * x.dtype.itemsize
                      + B * out_size * out_bytes
                      + sum(w.size * 2 for w in w_bf16)
                      + sum(b.size * 4 for b in b_f32))
    cost = pl.CostEstimate(flops=flops, transcendentals=B * out_size,
                           bytes_accessed=bytes_accessed)

    kernel = functools.partial(_softmax_mlp_kernel, n_layers=n_layers)

    def _call(weight_pipeline_mode):
        # x / out tiled over the batch grid; feature dims stay at their natural widths
        # (no 128-padding) — BlockSpec dims equal to the full array dims are legal.
        in_specs = [pl.BlockSpec((tile, in_size), lambda i: (i, 0))]
        for w, b in zip(w_bf16, b_f32):
            if weight_pipeline_mode is None:
                in_specs.append(pl.BlockSpec(w.shape, lambda i: (0, 0)))
                in_specs.append(pl.BlockSpec(b.shape, lambda i: (0, 0)))
            else:
                # Constant index_map -> the block never changes; single-buffer it so
                # resident-param VMEM is not doubled.
                in_specs.append(pl.BlockSpec(w.shape, lambda i: (0, 0),
                                             pipeline_mode=weight_pipeline_mode))
                in_specs.append(pl.BlockSpec(b.shape, lambda i: (0, 0),
                                             pipeline_mode=weight_pipeline_mode))
        out_spec = pl.BlockSpec((tile, out_size), lambda i: (i, 0))

        return pl.pallas_call(
            kernel,
            out_shape=jax.ShapeDtypeStruct((B, out_size), out_dtype),
            grid=grid,
            in_specs=in_specs,
            out_specs=out_spec,
            cost_estimate=cost,
            compiler_params=pltpu.CompilerParams(
                # Batch tiles are independent; on v7x this lets the grid shard across
                # both TensorCores (if a profile shows one TC idle, switch this axis
                # to pltpu.CORE_PARALLEL). No-op on v5e/v6e.
                dimension_semantics=("parallel",),
                vmem_limit_bytes=vmem_limit),
        )(*args)

    try:
        return _call(pl.Buffered(1))
    except Exception:
        # Fallback for jax versions that reject single-buffered pipeline_mode:
        # default double-buffering (2x resident-param VMEM, still correct).
        return _call(None)


def init_params(key, input_size, output_size, hidden_sizes,
                init_w=0.003, b_init_value=0.1):
    """Matches the PyTorch module's init:
       hidden: fanin_init weights (uniform +/- 1/sqrt(fan_in)), bias = 0.1
       last:   weights & bias uniform +/- init_w
       Weights are returned already transposed to [in, out]; biases as [1, out]."""
    weights, biases = [], []
    in_size = input_size
    for next_size in hidden_sizes:
        key, wk = jax.random.split(key)
        bound = 1.0 / jnp.sqrt(jnp.float32(in_size))
        w = jax.random.uniform(wk, (in_size, next_size), jnp.float32,
                               minval=-bound, maxval=bound)
        b = jnp.full((1, next_size), b_init_value, dtype=jnp.float32)
        weights.append(w)
        biases.append(b)
        in_size = next_size
    key, wk, bk = jax.random.split(key, 3)
    w_last = jax.random.uniform(wk, (in_size, output_size), jnp.float32,
                                minval=-init_w, maxval=init_w)
    b_last = jax.random.uniform(bk, (1, output_size), jnp.float32,
                                minval=-init_w, maxval=init_w)
    weights.append(w_last)
    biases.append(b_last)
    return weights, biases


def softmax_mlp_reference(x, weights, biases):
    h = x
    for w, b in zip(weights[:-1], biases[:-1]):
        h = h @ w + b
        h = jnp.where(h > 0, h, 0.01 * h)
    logits = h @ weights[-1] + biases[-1]
    return jax.nn.softmax(logits, axis=-1)


if __name__ == "__main__":
    key = jax.random.PRNGKey(0)

    batch = 32
    input_size = 16
    hidden_sizes = (32, 32)
    output_size = 8

    key, xk, pk = jax.random.split(key, 3)
    x = jax.random.normal(xk, (batch, input_size), dtype=jnp.float32)
    weights, biases = init_params(pk, input_size, output_size, hidden_sizes)

    # tile_m=16 so the small demo exercises a multi-step batch grid (32/16 = 2 steps).
    out = softmax_mlp_forward(x, weights, biases, tile_m=16)
    out = jax.block_until_ready(out)

    ref = softmax_mlp_reference(x, weights, biases)
    assert out.shape == (batch, output_size)
    assert bool(jnp.all(jnp.isfinite(out)))
    # Exact-divide softmax: rows sum to 1 to f32 precision.
    assert jnp.allclose(jnp.sum(out, axis=-1), 1.0, atol=1e-4)
    # bf16 MXU operands vs f32 reference.
    assert jnp.allclose(out, ref, atol=2e-2, rtol=0.0)

    print("KERNEL_OK")
</pallas_src>

<mosaic_0001>
module attributes {stable_mosaic.version = 11 : i64} {
  func.func @_softmax_mlp_kernel(%arg0: i32, %arg1: memref<16x16xf32, #tpu.memory_space<vmem>>, %arg2: memref<16x32xbf16, #tpu.memory_space<vmem>>, %arg3: memref<1x32xf32, #tpu.memory_space<vmem>>, %arg4: memref<32x32xbf16, #tpu.memory_space<vmem>>, %arg5: memref<1x32xf32, #tpu.memory_space<vmem>>, %arg6: memref<32x8xbf16, #tpu.memory_space<vmem>>, %arg7: memref<1x8xf32, #tpu.memory_space<vmem>>, %arg8: memref<16x8xf32, #tpu.memory_space<vmem>>) attributes {dimension_semantics = [#tpu.dimension_semantics<parallel>], iteration_bounds = array<i64: 2>, scalar_prefetch = 0 : i64, scratch_operands = 0 : i64, tpu.core_type = #tpu.core_type<tc>, window_params = [{transform_indices = @transform_0, window_bounds = array<i64: 16, 16>}, {pipeline_mode = #tpu.pipeline_mode<synchronous>, transform_indices = @transform_1, window_bounds = array<i64: 16, 32>}, {pipeline_mode = #tpu.pipeline_mode<synchronous>, transform_indices = @transform_2, window_bounds = array<i64: 1, 32>}, {pipeline_mode = #tpu.pipeline_mode<synchronous>, transform_indices = @transform_3, window_bounds = array<i64: 32, 32>}, {pipeline_mode = #tpu.pipeline_mode<synchronous>, transform_indices = @transform_4, window_bounds = array<i64: 1, 32>}, {pipeline_mode = #tpu.pipeline_mode<synchronous>, transform_indices = @transform_5, window_bounds = array<i64: 32, 8>}, {pipeline_mode = #tpu.pipeline_mode<synchronous>, transform_indices = @transform_6, window_bounds = array<i64: 1, 8>}, {transform_indices = @transform_7, window_bounds = array<i64: 16, 8>}]} {
    %c0 = arith.constant 0 : index
    %c0_0 = arith.constant 0 : index
    %0 = vector.load %arg1[%c0, %c0_0] : memref<16x16xf32, #tpu.memory_space<vmem>>, vector<16x16xf32>
    %1 = arith.truncf %0 : vector<16x16xf32> to vector<16x16xbf16>
    %c0_1 = arith.constant 0 : index
    %c0_2 = arith.constant 0 : index
    %2 = vector.load %arg2[%c0_1, %c0_2] : memref<16x32xbf16, #tpu.memory_space<vmem>>, vector<16x32xbf16>
    %c0_3 = arith.constant 0 : index
    %c0_4 = arith.constant 0 : index
    %3 = vector.load %arg3[%c0_3, %c0_4] : memref<1x32xf32, #tpu.memory_space<vmem>>, vector<1x32xf32>
    %cst = arith.constant dense<0.000000e+00> : vector<16x32xf32>
    %4 = tpu.matmul %1, %2, %cst {dimension_numbers = #tpu.dot_dimension_numbers<[1], [0], [0], [1], [0, 0, 1, 1], [], []>} : vector<16x16xbf16>, vector<16x32xbf16>, vector<16x32xf32> -> vector<16x32xf32>
    %5 = vector.broadcast %3 : vector<1x32xf32> to vector<16x32xf32>
    %6 = arith.addf %4, %5 : vector<16x32xf32>
    %cst_5 = arith.constant 0.00999999977 : f32
    %7 = vector.broadcast %cst_5 : f32 to vector<16x32xf32>
    %8 = arith.mulf %7, %6 : vector<16x32xf32>
    %9 = arith.maximumf %6, %8 : vector<16x32xf32>
    %10 = arith.truncf %9 : vector<16x32xf32> to vector<16x32xbf16>
    %c0_6 = arith.constant 0 : index
    %c0_7 = arith.constant 0 : index
    %11 = vector.load %arg4[%c0_6, %c0_7] : memref<32x32xbf16, #tpu.memory_space<vmem>>, vector<32x32xbf16>
    %c0_8 = arith.constant 0 : index
    %c0_9 = arith.constant 0 : index
    %12 = vector.load %arg5[%c0_8, %c0_9] : memref<1x32xf32, #tpu.memory_space<vmem>>, vector<1x32xf32>
    %cst_10 = arith.constant dense<0.000000e+00> : vector<16x32xf32>
    %13 = tpu.matmul %10, %11, %cst_10 {dimension_numbers = #tpu.dot_dimension_numbers<[1], [0], [0], [1], [0, 0, 1, 1], [], []>} : vector<16x32xbf16>, vector<32x32xbf16>, vector<16x32xf32> -> vector<16x32xf32>
    %14 = vector.broadcast %12 : vector<1x32xf32> to vector<16x32xf32>
    %15 = arith.addf %13, %14 : vector<16x32xf32>
    %cst_11 = arith.constant 0.00999999977 : f32
    %16 = vector.broadcast %cst_11 : f32 to vector<16x32xf32>
    %17 = arith.mulf %16, %15 : vector<16x32xf32>
    %18 = arith.maximumf %15, %17 : vector<16x32xf32>
    %19 = arith.truncf %18 : vector<16x32xf32> to vector<16x32xbf16>
    %c0_12 = arith.constant 0 : index
    %c0_13 = arith.constant 0 : index
    %20 = vector.load %arg6[%c0_12, %c0_13] : memref<32x8xbf16, #tpu.memory_space<vmem>>, vector<32x8xbf16>
    %c0_14 = arith.constant 0 : index
    %c0_15 = arith.constant 0 : index
    %21 = vector.load %arg7[%c0_14, %c0_15] : memref<1x8xf32, #tpu.memory_space<vmem>>, vector<1x8xf32>
    %cst_16 = arith.constant dense<0.000000e+00> : vector<16x8xf32>
    %22 = tpu.matmul %19, %20, %cst_16 {dimension_numbers = #tpu.dot_dimension_numbers<[1], [0], [0], [1], [0, 0, 1, 1], [], []>} : vector<16x32xbf16>, vector<32x8xbf16>, vector<16x8xf32> -> vector<16x8xf32>
    %23 = vector.broadcast %21 : vector<1x8xf32> to vector<16x8xf32>
    %24 = arith.addf %22, %23 : vector<16x8xf32>
    %cst_17 = arith.constant dense<0xFF800000> : vector<16xf32>
    %25 = vector.multi_reduction <maximumf>, %24, %cst_17 [1] : vector<16x8xf32> to vector<16xf32>
    %26 = vector.shape_cast %25 : vector<16xf32> to vector<16x1xf32>
    %27 = vector.broadcast %26 : vector<16x1xf32> to vector<16x8xf32>
    %28 = arith.subf %24, %27 : vector<16x8xf32>
    %29 = math.exp %28 : vector<16x8xf32>
    %cst_18 = arith.constant dense<0.000000e+00> : vector<16xf32>
    %30 = vector.multi_reduction <add>, %29, %cst_18 [1] : vector<16x8xf32> to vector<16xf32>
    %31 = vector.shape_cast %30 : vector<16xf32> to vector<16x1xf32>
    %cst_19 = arith.constant 1.000000e+00 : f32
    %32 = vector.broadcast %cst_19 : f32 to vector<16x1xf32>
    %33 = arith.divf %32, %31 : vector<16x1xf32>
    %34 = vector.broadcast %33 : vector<16x1xf32> to vector<16x8xf32>
    %35 = arith.mulf %29, %34 : vector<16x8xf32>
    %c0_20 = arith.constant 0 : index
    %c0_21 = arith.constant 0 : index
    %36 = vector.load %arg8[%c0_20, %c0_21] : memref<16x8xf32, #tpu.memory_space<vmem>>, vector<16x8xf32>
    tpu.vector_store %arg8[%c0_20, %c0_21], %35 {strides = array<i32>} : memref<16x8xf32, #tpu.memory_space<vmem>>, vector<16x8xf32>,
    return
  }
  func.func @transform_0(%arg0: i32) -> (i32, i32) {
    %c0_i32 = arith.constant 0 : i32
    %c0_i32_0 = arith.constant 0 : i32
    return %arg0, %c0_i32 : i32, i32
  }
  func.func @transform_1(%arg0: i32) -> (i32, i32) {
    %c0_i32 = arith.constant 0 : i32
    %c0_i32_0 = arith.constant 0 : i32
    %c0_i32_1 = arith.constant 0 : i32
    return %c0_i32, %c0_i32_0 : i32, i32
  }
  func.func @transform_2(%arg0: i32) -> (i32, i32) {
    %c0_i32 = arith.constant 0 : i32
    %c0_i32_0 = arith.constant 0 : i32
    %c0_i32_1 = arith.constant 0 : i32
    return %c0_i32, %c0_i32_0 : i32, i32
  }
  func.func @transform_3(%arg0: i32) -> (i32, i32) {
    %c0_i32 = arith.constant 0 : i32
    %c0_i32_0 = arith.constant 0 : i32
    %c0_i32_1 = arith.constant 0 : i32
    return %c0_i32, %c0_i32_0 : i32, i32
  }
  func.func @transform_4(%arg0: i32) -> (i32, i32) {
    %c0_i32 = arith.constant 0 : i32
    %c0_i32_0 = arith.constant 0 : i32
    %c0_i32_1 = arith.constant 0 : i32
    return %c0_i32, %c0_i32_0 : i32, i32
  }
  func.func @transform_5(%arg0: i32) -> (i32, i32) {
    %c0_i32 = arith.constant 0 : i32
    %c0_i32_0 = arith.constant 0 : i32
    %c0_i32_1 = arith.constant 0 : i32
    return %c0_i32, %c0_i32_0 : i32, i32
  }
  func.func @transform_6(%arg0: i32) -> (i32, i32) {
    %c0_i32 = arith.constant 0 : i32
    %c0_i32_0 = arith.constant 0 : i32
    %c0_i32_1 = arith.constant 0 : i32
    return %c0_i32, %c0_i32_0 : i32, i32
  }
  func.func @transform_7(%arg0: i32) -> (i32, i32) {
    %c0_i32 = arith.constant 0 : i32
    %c0_i32_0 = arith.constant 0 : i32
    return %arg0, %c0_i32 : i32, i32
  }
}

module attributes {stable_mosaic.version = 11 : i64} {
  func.func @_softmax_mlp_kernel(%arg0: i32, %arg1: memref<16x16xf32, #tpu.memory_space<vmem>>, %arg2: memref<16x32xbf16, #tpu.memory_space<vmem>>, %arg3: memref<1x32xf32, #tpu.memory_space<vmem>>, %arg4: memref<32x32xbf16, #tpu.memory_space<vmem>>, %arg5: memref<1x32xf32, #tpu.memory_space<vmem>>, %arg6: memref<32x8xbf16, #tpu.memory_space<vmem>>, %arg7: memref<1x8xf32, #tpu.memory_space<vmem>>, %arg8: memref<16x8xf32, #tpu.memory_space<vmem>>) attributes {dimension_semantics = [#tpu.dimension_semantics<parallel>], iteration_bounds = array<i64: 2>, scalar_prefetch = 0 : i64, scratch_operands = 0 : i64, tpu.core_type = #tpu.core_type<tc>, window_params = [{transform_indices = @transform_0, window_bounds = array<i64: 16, 16>}, {pipeline_mode = #tpu.pipeline_mode<synchronous>, transform_indices = @transform_1, window_bounds = array<i64: 16, 32>}, {pipeline_mode = #tpu.pipeline_mode<synchronous>, transform_indices = @transform_2, window_bounds = array<i64: 1, 32>}, {pipeline_mode = #tpu.pipeline_mode<synchronous>, transform_indices = @transform_3, window_bounds = array<i64: 32, 32>}, {pipeline_mode = #tpu.pipeline_mode<synchronous>, transform_indices = @transform_4, window_bounds = array<i64: 1, 32>}, {pipeline_mode = #tpu.pipeline_mode<synchronous>, transform_indices = @transform_5, window_bounds = array<i64: 32, 8>}, {pipeline_mode = #tpu.pipeline_mode<synchronous>, transform_indices = @transform_6, window_bounds = array<i64: 1, 8>}, {transform_indices = @transform_7, window_bounds = array<i64: 16, 8>}]} {
    %c0 = arith.constant 0 : index
    %c0_0 = arith.constant 0 : index
    %0 = vector.load %arg1[%c0, %c0_0] : memref<16x16xf32, #tpu.memory_space<vmem>>, vector<16x16xf32>
    %1 = arith.truncf %0 : vector<16x16xf32> to vector<16x16xbf16>
    %c0_1 = arith.constant 0 : index
    %c0_2 = arith.constant 0 : index
    %2 = vector.load %arg2[%c0_1, %c0_2] : memref<16x32xbf16, #tpu.memory_space<vmem>>, vector<16x32xbf16>
    %c0_3 = arith.constant 0 : index
    %c0_4 = arith.constant 0 : index
    %3 = vector.load %arg3[%c0_3, %c0_4] : memref<1x32xf32, #tpu.memory_space<vmem>>, vector<1x32xf32>
    %cst = arith.constant dense<0.000000e+00> : vector<16x32xf32>
    %4 = tpu.matmul %1, %2, %cst {dimension_numbers = #tpu.dot_dimension_numbers<[1], [0], [0], [1], [0, 0, 1, 1], [], []>} : vector<16x16xbf16>, vector<16x32xbf16>, vector<16x32xf32> -> vector<16x32xf32>
    %5 = vector.broadcast %3 : vector<1x32xf32> to vector<16x32xf32>
    %6 = arith.addf %4, %5 : vector<16x32xf32>
    %cst_5 = arith.constant 0.00999999977 : f32
    %7 = vector.broadcast %cst_5 : f32 to vector<16x32xf32>
    %8 = arith.mulf %7, %6 : vector<16x32xf32>
    %9 = arith.maximumf %6, %8 : vector<16x32xf32>
    %10 = arith.truncf %9 : vector<16x32xf32> to vector<16x32xbf16>
    %c0_6 = arith.constant 0 : index
    %c0_7 = arith.constant 0 : index
    %11 = vector.load %arg4[%c0_6, %c0_7] : memref<32x32xbf16, #tpu.memory_space<vmem>>, vector<32x32xbf16>
    %c0_8 = arith.constant 0 : index
    %c0_9 = arith.constant 0 : index
    %12 = vector.load %arg5[%c0_8, %c0_9] : memref<1x32xf32, #tpu.memory_space<vmem>>, vector<1x32xf32>
    %cst_10 = arith.constant dense<0.000000e+00> : vector<16x32xf32>
    %13 = tpu.matmul %10, %11, %cst_10 {dimension_numbers = #tpu.dot_dimension_numbers<[1], [0], [0], [1], [0, 0, 1, 1], [], []>} : vector<16x32xbf16>, vector<32x32xbf16>, vector<16x32xf32> -> vector<16x32xf32>
    %14 = vector.broadcast %12 : vector<1x32xf32> to vector<16x32xf32>
    %15 = arith.addf %13, %14 : vector<16x32xf32>
    %cst_11 = arith.constant 0.00999999977 : f32
    %16 = vector.broadcast %cst_11 : f32 to vector<16x32xf32>
    %17 = arith.mulf %16, %15 : vector<16x32xf32>
    %18 = arith.maximumf %15, %17 : vector<16x32xf32>
    %19 = arith.truncf %18 : vector<16x32xf32> to vector<16x32xbf16>
    %c0_12 = arith.constant 0 : index
    %c0_13 = arith.constant 0 : index
    %20 = vector.load %arg6[%c0_12, %c0_13] : memref<32x8xbf16, #tpu.memory_space<vmem>>, vector<32x8xbf16>
    %c0_14 = arith.constant 0 : index
    %c0_15 = arith.constant 0 : index
    %21 = vector.load %arg7[%c0_14, %c0_15] : memref<1x8xf32, #tpu.memory_space<vmem>>, vector<1x8xf32>
    %cst_16 = arith.constant dense<0.000000e+00> : vector<16x8xf32>
    %22 = tpu.matmul %19, %20, %cst_16 {dimension_numbers = #tpu.dot_dimension_numbers<[1], [0], [0], [1], [0, 0, 1, 1], [], []>} : vector<16x32xbf16>, vector<32x8xbf16>, vector<16x8xf32> -> vector<16x8xf32>
    %23 = vector.broadcast %21 : vector<1x8xf32> to vector<16x8xf32>
    %24 = arith.addf %22, %23 : vector<16x8xf32>
    %cst_17 = arith.constant dense<0xFF800000> : vector<16xf32>
    %25 = vector.multi_reduction <maximumf>, %24, %cst_17 [1] : vector<16x8xf32> to vector<16xf32>
    %26 = vector.shape_cast %25 : vector<16xf32> to vector<16x1xf32>
    %27 = vector.broadcast %26 : vector<16x1xf32> to vector<16x8xf32>
    %28 = arith.subf %24, %27 : vector<16x8xf32>
    %29 = math.exp %28 : vector<16x8xf32>
    %cst_18 = arith.constant dense<0.000000e+00> : vector<16xf32>
    %30 = vector.multi_reduction <add>, %29, %cst_18 [1] : vector<16x8xf32> to vector<16xf32>
    %31 = vector.shape_cast %30 : vector<16xf32> to vector<16x1xf32>
    %cst_19 = arith.constant 1.000000e+00 : f32
    %32 = vector.broadcast %cst_19 : f32 to vector<16x1xf32>
    %33 = arith.divf %32, %31 : vector<16x1xf32>
    %34 = vector.broadcast %33 : vector<16x1xf32> to vector<16x8xf32>
    %35 = arith.mulf %29, %34 : vector<16x8xf32>
    %c0_20 = arith.constant 0 : index
    %c0_21 = arith.constant 0 : index
    %36 = vector.load %arg8[%c0_20, %c0_21] : memref<16x8xf32, #tpu.memory_space<vmem>>, vector<16x8xf32>
    tpu.vector_store %arg8[%c0_20, %c0_21], %35 {strides = array<i32>} : memref<16x8xf32, #tpu.memory_space<vmem>>, vector<16x8xf32>,
    return
  }
  func.func @transform_0(%arg0: i32) -> (i32, i32) {
    %c0_i32 = arith.constant 0 : i32
    %c0_i32_0 = arith.constant 0 : i32
    return %arg0, %c0_i32 : i32, i32
  }
  func.func @transform_1(%arg0: i32) -> (i32, i32) {
    %c0_i32 = arith.constant 0 : i32
    %c0_i32_0 = arith.constant 0 : i32
    %c0_i32_1 = arith.constant 0 : i32
    return %c0_i32, %c0_i32_0 : i32, i32
  }
  func.func @transform_2(%arg0: i32) -> (i32, i32) {
    %c0_i32 = arith.constant 0 : i32
    %c0_i32_0 = arith.constant 0 : i32
    %c0_i32_1 = arith.constant 0 : i32
    return %c0_i32, %c0_i32_0 : i32, i32
  }
  func.func @transform_3(%arg0: i32) -> (i32, i32) {
    %c0_i32 = arith.constant 0 : i32
    %c0_i32_0 = arith.constant 0 : i32
    %c0_i32_1 = arith.constant 0 : i32
    return %c0_i32, %c0_i32_0 : i32, i32
  }
  func.func @transform_4(%arg0: i32) -> (i32, i32) {
    %c0_i32 = arith.constant 0 : i32
    %c0_i32_0 = arith.constant 0 : i32
    %c0_i32_1 = arith.constant 0 : i32
    return %c0_i32, %c0_i32_0 : i32, i32
  }
  func.func @transform_5(%arg0: i32) -> (i32, i32) {
    %c0_i32 = arith.constant 0 : i32
    %c0_i32_0 = arith.constant 0 : i32
    %c0_i32_1 = arith.constant 0 : i32
    return %c0_i32, %c0_i32_0 : i32, i32
  }
  func.func @transform_6(%arg0: i32) -> (i32, i32) {
    %c0_i32 = arith.constant 0 : i32
    %c0_i32_0 = arith.constant 0 : i32
    %c0_i32_1 = arith.constant 0 : i32
    return %c0_i32, %c0_i32_0 : i32, i32
  }
  func.func @transform_7(%arg0: i32) -> (i32, i32) {
    %c0_i32 = arith.constant 0 : i32
    %c0_i32_0 = arith.constant 0 : i32
    return %arg0, %c0_i32 : i32, i32
  }
}

</mosaic_0001>

<llo_original>
// kernel: tpu_custom_call.1
$region0: #{tpu_custom_call.1}
  #allocation0 [shape = 'u32[]', space=smem, size = 0x4, offset = 0x4, fixed_abs, tag = 'smem constant byte address 0x4 - core index']
  #allocation1 [shape = 'u32[72,128]{1,0:T(1,128)}', space=vmem, size = 0x9000, scoped, tag = 'internal scratch']
  %s0 = inlined_call_operand.vmem [shape: f32[32,16], index: 0, kind: input, shape index: {}]
  %s1 = inlined_call_operand.vmem [shape: bf16[16,32], index: 1, kind: input, shape index: {}]
  %s2 = inlined_call_operand.vmem [shape: f32[1,32], index: 2, kind: input, shape index: {}]
  %s3 = inlined_call_operand.vmem [shape: bf16[32,32], index: 3, kind: input, shape index: {}]
  %s4 = inlined_call_operand.vmem [shape: f32[1,32], index: 4, kind: input, shape index: {}]
  %s5 = inlined_call_operand.vmem [shape: bf16[32,8], index: 5, kind: input, shape index: {}]
  %s6 = inlined_call_operand.vmem [shape: f32[1,8], index: 6, kind: input, shape index: {}]
  %s7 = inlined_call_operand.vmem [shape: f32[32,8], index: 7, kind: output, shape index: {}]
  %s8 = sld [smem:[#allocation0]]
  $region61: #{tpu_custom_call.1} parent=0
    _
  %s10 = ssub.s32 1, %s8
  %s11 = scalar_select 0, %s10, %s8
  loop: start=0, step=1, limit=4
  $region2: #{tpu_custom_call.1} parent=0 // loop_pre_header
    _
  $region3: #{tpu_custom_call.1} parent=0 // loop_header
    %s13 = sphi 0, %s17
    %p14 = scmp.ge.s32.totalorder %s13, 4
    %s23 = sphi 0, %s25
    %s26 = sphi 0, %s23
    %s27 = sphi 0, %s26
    %s43 = sphi 0, %s27
    %s47 = sphi 0, %s47
    %s49 = sphi 0, %s47
    %s50 = sphi 0, %s49
    %s64 = sphi 0, %s50
    %s68 = sphi 0, %s68
    %s70 = sphi 0, %s68
    %s71 = sphi 0, %s70
    %s85 = sphi 0, %s71
    %s89 = sphi 0, %s89
    %s91 = sphi 0, %s89
    %s92 = sphi 0, %s91
    %s106 = sphi 0, %s92
    %s110 = sphi 0, %s110
    %s112 = sphi 0, %s110
    %s113 = sphi 0, %s112
    %s127 = sphi 0, %s113
    %s131 = sphi 0, %s131
    %s133 = sphi 0, %s131
    %s134 = sphi 0, %s133
    %s148 = sphi 0, %s134
    %s152 = sphi 0, %s152
    %s154 = sphi 0, %s152
    %s155 = sphi 0, %s154
    %s169 = sphi 0, %s155
    %s175 = sphi 0, %s177
    %s178 = sphi 0, %s175
    %s179 = sphi 0, %s178
    %s195 = sphi 0, %s179
  $region4: #{tpu_custom_call.1} parent=0 // loop_header_branch
    %16 = sbr.rel (%p14) target = $region8
  $region5: #{tpu_custom_call.1} parent=0 // loop_body
    %s18 = ssub.s32 %s13, 1
    %s19 = ssub.s32 %s13, 2
    %s20 = sadd.s32 %s13, 1
    %s21 = ssub.s32 %s13, %s20
    %p22 = scmp.eq.s32.totalorder %s21, 0
    %s24 = sadd.s32 %s23, 1
    %s25 = scalar_select %p22, %s23, %s24
    %p28 = pneg %p22
    %p29 = scmp.eq.s32.totalorder %s13, 1
    %p30 = por %p28, %p29
    %p31 = scmp.ne.s32.totalorder %s23, %s26
    %p32 = scmp.eq.s32.totalorder %s13, 0
    %p33 = por %p31, %p32
    %p34 = scmp.ne.s32.totalorder %s23, %s26
    %p35 = scmp.eq.s32.totalorder %s18, 1
    %p36 = por %p34, %p35
    %p37 = scmp.ne.s32.totalorder %s26, %s27
    %p38 = scmp.eq.s32.totalorder %s18, 0
    %p39 = por %p37, %p38
    %p40 = scmp.ne.s32.totalorder %s26, %s27
    %p41 = scmp.eq.s32.totalorder %s19, 1
    %p42 = por %p40, %p41
    %p44 = scmp.ne.s32.totalorder %s27, %s43
    %p45 = scmp.eq.s32.totalorder %s19, 0
    %p46 = por %p44, %p45
    %s48 = sadd.s32 %s47, 1
    %p51 = scmp.eq.s32.totalorder %s13, 1
    %p52 = scmp.ne.s32.totalorder %s47, %s49
    %p53 = scmp.eq.s32.totalorder %s13, 0
    %p54 = por %p52, %p53
    %p55 = scmp.ne.s32.totalorder %s47, %s49
    %p56 = scmp.eq.s32.totalorder %s18, 1
    %p57 = por %p55, %p56
    %p58 = scmp.ne.s32.totalorder %s49, %s50
    %p59 = scmp.eq.s32.totalorder %s18, 0
    %p60 = por %p58, %p59
    %p61 = scmp.ne.s32.totalorder %s49, %s50
    %p62 = scmp.eq.s32.totalorder %s19, 1
    %p63 = por %p61, %p62
    %p65 = scmp.ne.s32.totalorder %s50, %s64
    %p66 = scmp.eq.s32.totalorder %s19, 0
    %p67 = por %p65, %p66
    %s69 = sadd.s32 %s68, 1
    %p72 = scmp.eq.s32.totalorder %s13, 1
    %p73 = scmp.ne.s32.totalorder %s68, %s70
    %p74 = scmp.eq.s32.totalorder %s13, 0
    %p75 = por %p73, %p74
    %p76 = scmp.ne.s32.totalorder %s68, %s70
    %p77 = scmp.eq.s32.totalorder %s18, 1
    %p78 = por %p76, %p77
    %p79 = scmp.ne.s32.totalorder %s70, %s71
    %p80 = scmp.eq.s32.totalorder %s18, 0
    %p81 = por %p79, %p80
    %p82 = scmp.ne.s32.totalorder %s70, %s71
    %p83 = scmp.eq.s32.totalorder %s19, 1
    %p84 = por %p82, %p83
    %p86 = scmp.ne.s32.totalorder %s71, %s85
    %p87 = scmp.eq.s32.totalorder %s19, 0
    %p88 = por %p86, %p87
    %s90 = sadd.s32 %s89, 1
    %p93 = scmp.eq.s32.totalorder %s13, 1
    %p94 = scmp.ne.s32.totalorder %s89, %s91
    %p95 = scmp.eq.s32.totalorder %s13, 0
    %p96 = por %p94, %p95
    %p97 = scmp.ne.s32.totalorder %s89, %s91
    %p98 = scmp.eq.s32.totalorder %s18, 1
    %p99 = por %p97, %p98
    %p100 = scmp.ne.s32.totalorder %s91, %s92
    %p101 = scmp.eq.s32.totalorder %s18, 0
    %p102 = por %p100, %p101
    %p103 = scmp.ne.s32.totalorder %s91, %s92
    %p104 = scmp.eq.s32.totalorder %s19, 1
    %p105 = por %p103, %p104
    %p107 = scmp.ne.s32.totalorder %s92, %s106
    %p108 = scmp.eq.s32.totalorder %s19, 0
    %p109 = por %p107, %p108
    %s111 = sadd.s32 %s110, 1
    %p114 = scmp.eq.s32.totalorder %s13, 1
    %p115 = scmp.ne.s32.totalorder %s110, %s112
    %p116 = scmp.eq.s32.totalorder %s13, 0
    %p117 = por %p115, %p116
    %p118 = scmp.ne.s32.totalorder %s110, %s112
    %p119 = scmp.eq.s32.totalorder %s18, 1
    %p120 = por %p118, %p119
    %p121 = scmp.ne.s32.totalorder %s112, %s113
    %p122 = scmp.eq.s32.totalorder %s18, 0
    %p123 = por %p121, %p122
    %p124 = scmp.ne.s32.totalorder %s112, %s113
    %p125 = scmp.eq.s32.totalorder %s19, 1
    %p126 = por %p124, %p125
    %p128 = scmp.ne.s32.totalorder %s113, %s127
    %p129 = scmp.eq.s32.totalorder %s19, 0
    %p130 = por %p128, %p129
    %s132 = sadd.s32 %s131, 1
    %p135 = scmp.eq.s32.totalorder %s13, 1
    %p136 = scmp.ne.s32.totalorder %s131, %s133
    %p137 = scmp.eq.s32.totalorder %s13, 0
    %p138 = por %p136, %p137
    %p139 = scmp.ne.s32.totalorder %s131, %s133
    %p140 = scmp.eq.s32.totalorder %s18, 1
    %p141 = por %p139, %p140
    %p142 = scmp.ne.s32.totalorder %s133, %s134
    %p143 = scmp.eq.s32.totalorder %s18, 0
    %p144 = por %p142, %p143
    %p145 = scmp.ne.s32.totalorder %s133, %s134
    %p146 = scmp.eq.s32.totalorder %s19, 1
    %p147 = por %p145, %p146
    %p149 = scmp.ne.s32.totalorder %s134, %s148
    %p150 = scmp.eq.s32.totalorder %s19, 0
    %p151 = por %p149, %p150
    %s153 = sadd.s32 %s152, 1
    %p156 = scmp.eq.s32.totalorder %s13, 1
    %p157 = scmp.ne.s32.totalorder %s152, %s154
    %p158 = scmp.eq.s32.totalorder %s13, 0
    %p159 = por %p157, %p158
    %p160 = scmp.ne.s32.totalorder %s152, %s154
    %p161 = scmp.eq.s32.totalorder %s18, 1
    %p162 = por %p160, %p161
    %p163 = scmp.ne.s32.totalorder %s154, %s155
    %p164 = scmp.eq.s32.totalorder %s18, 0
    %p165 = por %p163, %p164
    %p166 = scmp.ne.s32.totalorder %s154, %s155
    %p167 = scmp.eq.s32.totalorder %s19, 1
    %p168 = por %p166, %p167
    %p170 = scmp.ne.s32.totalorder %s155, %s169
    %p171 = scmp.eq.s32.totalorder %s19, 0
    %p172 = por %p170, %p171
    %s173 = ssub.s32 %s13, %s20
    %p174 = scmp.eq.s32.totalorder %s173, 0
    %s176 = sadd.s32 %s175, 1
    %s177 = scalar_select %p174, %s175, %s176
    %p180 = pneg %p174
    %p181 = scmp.eq.s32.totalorder %s13, 1
    %p182 = por %p180, %p181
    %p183 = scmp.ne.s32.totalorder %s175, %s178
    %p184 = scmp.eq.s32.totalorder %s13, 0
    %p185 = por %p183, %p184
    %p186 = scmp.ne.s32.totalorder %s175, %s178
    %p187 = scmp.eq.s32.totalorder %s18, 1
    %p188 = por %p186, %p187
    %p189 = scmp.ne.s32.totalorder %s178, %s179
    %p190 = scmp.eq.s32.totalorder %s18, 0
    %p191 = por %p189, %p190
    %p192 = scmp.ne.s32.totalorder %s178, %s179
    %p193 = scmp.eq.s32.totalorder %s19, 1
    %p194 = por %p192, %p193
    %p196 = scmp.ne.s32.totalorder %s179, %s195
    %p197 = scmp.eq.s32.totalorder %s19, 0
    %p198 = por %p196, %p197
    %p199 = scmp.le.s32.totalorder 1, %s13
    %p200 = scmp.lt.s32.totalorder %s13, 3
    %p201 = pnand %p199, %p200
    %p202 = pneg %p201
    // Predicated region
    $region9: #{tpu_custom_call.1} parent=5 // pred_check
      _
    $region10: #{tpu_custom_call.1} parent=5 // pred_check_branch
      %204 = sbr.rel (%p201) target = $region12
    $region11: #{tpu_custom_call.1} parent=5 // pred_region
      %s205 = ssub.s32 %s13, 1
      // Predicated region
      $region13: #{tpu_custom_call.1} parent=11 // pred_check
        %p206 = pneg %p60
      $region14: #{tpu_custom_call.1} parent=11 // pred_check_branch
        %208 = sbr.rel (%p206) target = $region16
      $region15: #{tpu_custom_call.1} parent=11 // pred_region
        _
      $region16: #{tpu_custom_call.1} parent=11 // pred_fallthru
        _
      // Predicated region
      $region17: #{tpu_custom_call.1} parent=11 // pred_check
        %p209 = pneg %p81
      $region18: #{tpu_custom_call.1} parent=11 // pred_check_branch
        %211 = sbr.rel (%p209) target = $region20
      $region19: #{tpu_custom_call.1} parent=11 // pred_region
        _
      $region20: #{tpu_custom_call.1} parent=11 // pred_fallthru
        _
      // Predicated region
      $region21: #{tpu_custom_call.1} parent=11 // pred_check
        %p212 = pneg %p102
      $region22: #{tpu_custom_call.1} parent=11 // pred_check_branch
        %214 = sbr.rel (%p212) target = $region24
      $region23: #{tpu_custom_call.1} parent=11 // pred_region
        _
      $region24: #{tpu_custom_call.1} parent=11 // pred_fallthru
        _
      // Predicated region
      $region25: #{tpu_custom_call.1} parent=11 // pred_check
        %p215 = pneg %p123
      $region26: #{tpu_custom_call.1} parent=11 // pred_check_branch
        %217 = sbr.rel (%p215) target = $region28
      $region27: #{tpu_custom_call.1} parent=11 // pred_region
        _
      $region28: #{tpu_custom_call.1} parent=11 // pred_fallthru
        _
      // Predicated region
      $region29: #{tpu_custom_call.1} parent=11 // pred_check
        %p218 = pneg %p144
      $region30: #{tpu_custom_call.1} parent=11 // pred_check_branch
        %220 = sbr.rel (%p218) target = $region32
      $region31: #{tpu_custom_call.1} parent=11 // pred_region
        _
      $region32: #{tpu_custom_call.1} parent=11 // pred_fallthru
        _
      // Predicated region
      $region33: #{tpu_custom_call.1} parent=11 // pred_check
        %p221 = pneg %p165
      $region34: #{tpu_custom_call.1} parent=11 // pred_check_branch
        %223 = sbr.rel (%p221) target = $region36
      $region35: #{tpu_custom_call.1} parent=11 // pred_region
        _
      $region36: #{tpu_custom_call.1} parent=11 // pred_fallthru
        _
    $region12: #{tpu_custom_call.1} parent=5 // pred_fallthru
      _
    %p224 = scmp.lt.s32.totalorder %s13, 2
    // Predicated region
    $region37: #{tpu_custom_call.1} parent=5 // pred_check
      %p225 = pneg %p224
    $region38: #{tpu_custom_call.1} parent=5 // pred_check_branch
      %227 = sbr.rel (%p225) target = $region40
    $region39: #{tpu_custom_call.1} parent=5 // pred_region
      // Predicated region
      $region41: #{tpu_custom_call.1} parent=39 // pred_check
        %p228 = pneg %p33
      $region42: #{tpu_custom_call.1} parent=39 // pred_check_branch
        %230 = sbr.rel (%p228) target = $region44
      $region43: #{tpu_custom_call.1} parent=39 // pred_region
        %s231 = smul.u32 2, %s13
        %p232 = scmp.lt.s32.totalorder %s231, 3
        %s233 = scalar_select %p232, %s231, 3
        %s234 = smul.addr %s233, 8
        %s235 = scalar_lea.vmem %s0, %s234
        %s236 = smul.u32 2, %s13
      $region44: #{tpu_custom_call.1} parent=39 // pred_fallthru
        _
    $region40: #{tpu_custom_call.1} parent=5 // pred_fallthru
      _
    %p237 = scmp.le.s32.totalorder 1, %s13
    %p238 = scmp.lt.s32.totalorder %s13, 3
    %p239 = pnand %p237, %p238
    %p240 = pneg %p239
    // Predicated region
    $region45: #{tpu_custom_call.1} parent=5 // pred_check
      _
    $region46: #{tpu_custom_call.1} parent=5 // pred_check_branch
      %242 = sbr.rel (%p239) target = $region48
    $region47: #{tpu_custom_call.1} parent=5 // pred_region
      %s243 = ssub.s32 %s13, 1
      %s244 = smul.u32 2, %s18
      %p245 = scmp.lt.s32.totalorder %s244, 3
      %s246 = scalar_select %p245, %s244, 3
      %s247 = smul.addr %s246, 8
      %s248 = scalar_lea.vmem %s0, %s247
      %p249 = pneg %p39
      %p250 = pneg %p36
      %p251 = pneg %p60
      %p252 = pneg %p57
      %p253 = pneg %p81
      %p254 = pneg %p78
      %p255 = pneg %p102
      %p256 = pneg %p99
      %p257 = pneg %p123
      %p258 = pneg %p120
      %p259 = pneg %p144
      %p260 = pneg %p141
      %p261 = pneg %p165
      %p262 = pneg %p162
      %p263 = pneg %p191
      %p264 = pneg %p188
      %s265 = smul.u32 2, %s18
      %p266 = scmp.lt.s32.totalorder %s265, 3
      %s267 = scalar_select %p266, %s265, 3
      %s268 = smul.addr %s267, 8
      %s269 = scalar_lea.vmem %s7, %s268
      %s270 = smul.u32 2, %s18
      %p271 = scmp.lt.s32.totalorder %s270, 3
      %s272 = scalar_select %p271, %s270, 3
      %s273 = smul.addr %s272, 8
      %s274 = scalar_lea.vmem %s0, %s273
      %s275 = smul.u32 2, %s18
      %s276 = smul.u32 2, %s18
      %p277 = scmp.lt.s32.totalorder %s276, 3
      %s278 = scalar_select %p277, %s276, 3
      %s279 = smul.addr %s278, 8
      %s280 = scalar_lea.vmem %s7, %s279
      %s281 = smul.u32 2, %s18
      %v283 = vld [vmem:[%s274] sm:$0xff]
      %v284 = vld [vmem:[%s274 + $0x8] sm:$0xff]
      %v285 = vpack.c.bf16 %v284, %v283
      %v286 = vld [vmem:[%s1] sm:$0xf]
      %v287 = vld [vmem:[%s1 + $0x4] sm:$0xf]
      %v288 = vld [vmem:[%s2] sm:$0x1]
      %v290 = vperm.slane %v288, 0
      %v294 = vunpack.c.l.b16 %v286
      %v295 = vunpack.c.l.b16 %v287
      %v296 = vpack.c.b16 %v295, %v294
      %vm298 = vcmask 130048
      %v300 = vsel %vm298, %v285, 0
      %302 = vmatpush.bf16.msra.mxu0 0
      %303 = vmatpush.bf16.msra.mxu0 0
      %304 = vmatpush.bf16.msra.mxu0 0
      %305 = vmatpush.bf16.msra.mxu0 0
      %306 = vmatpush.bf16.msra.mxu0 0
      %307 = vmatpush.bf16.msra.mxu0 0
      %308 = vmatpush.bf16.msra.mxu0 0
      %309 = vmatpush.bf16.msra.mxu0 %v296
      %310 = vmatmul.bf16.gmra.mxu0 %v300
      %v311 = vpop.f32.mrf.mxu0
      %v312 = vadd.f32 %v290, %v311
      %v313 = vpop.f32.mrf.mxu0
      %v314 = vadd.f32 %v290, %v313
      %315 = vdwg.mxu0
      %v316 = vmul.f32 %v312, 0.01
      %v317 = vmul.f32 %v314, 0.01
      %v318 = vmax.f32 %v312, %v316
      %v319 = vmax.f32 %v314, %v317
      %v320 = vpack.c.bf16 %v319, %v318
      %v321 = vld [vmem:[%s3] sm:$0xf]
      %v322 = vld [vmem:[%s3 + $0x4] sm:$0xf]
      %v323 = vld [vmem:[%s3 + $0x8] sm:$0xf]
      %v324 = vld [vmem:[%s3 + $0xc] sm:$0xf]
      %v325 = vld [vmem:[%s4] sm:$0x1]
      %v327 = vperm.slane %v325, 0
      %v333 = vunpack.c.l.b16 %v321
      %v334 = vunpack.c.l.b16 %v322
      %v335 = vunpack.c.l.b16 %v323
      %v336 = vunpack.c.l.b16 %v324
      %v337 = vpack.c.b16 %v334, %v333
      %v338 = vpack.c.b16 %v336, %v335
      %vm341 = vcmask 261120
      %v343 = vsel %vm341, %v320, 0
      %345 = vmatpush.bf16.msra.mxu0 0
      %346 = vmatpush.bf16.msra.mxu0 0
      %347 = vmatpush.bf16.msra.mxu0 0
      %348 = vmatpush.bf16.msra.mxu0 0
      %349 = vmatpush.bf16.msra.mxu0 0
      %350 = vmatpush.bf16.msra.mxu0 0
      %351 = vmatpush.bf16.msra.mxu0 %v338
      %352 = vmatpush.bf16.msra.mxu0 %v337
      %353 = vmatmul.bf16.gmra.mxu0 %v343
      %v354 = vpop.f32.mrf.mxu0
      %v355 = vadd.f32 %v327, %v354
      %v356 = vpop.f32.mrf.mxu0
      %v357 = vadd.f32 %v327, %v356
      %358 = vdwg.mxu0
      %v359 = vmul.f32 %v355, 0.01
      %v360 = vmul.f32 %v357, 0.01
      %v361 = vmax.f32 %v355, %v359
      %v362 = vmax.f32 %v357, %v360
      %v363 = vpack.c.bf16 %v362, %v361
      %v364 = vld [vmem:[%s5] sm:$0xf]
      %v365 = vld [vmem:[%s5 + $0x4] sm:$0xf]
      %v366 = vld [vmem:[%s5 + $0x8] sm:$0xf]
      %v367 = vld [vmem:[%s5 + $0xc] sm:$0xf]
      %v368 = vld [vmem:[%s6] sm:$0x1]
      %v370 = vperm.slane %v368, 0
      %v376 = vunpack.c.l.b16 %v364
      %v377 = vunpack.c.l.b16 %v365
      %v378 = vunpack.c.l.b16 %v366
      %v379 = vunpack.c.l.b16 %v367
      %v380 = vpack.c.b16 %v377, %v376
      %v381 = vpack.c.b16 %v379, %v378
      %v385 = vsel %vm341, %v363, 0
      %387 = vmatpush.bf16.msra.mxu0 0
      %388 = vmatpush.bf16.msra.mxu0 0
      %389 = vmatpush.bf16.msra.mxu0 0
      %390 = vmatpush.bf16.msra.mxu0 0
      %391 = vmatpush.bf16.msra.mxu0 0
      %392 = vmatpush.bf16.msra.mxu0 0
      %393 = vmatpush.bf16.msra.mxu0 %v381
      %394 = vmatpush.bf16.msra.mxu0 %v380
      %395 = vmatmul.bf16.gmra.mxu0 %v385
      %v396 = vpop.f32.mrf.mxu0
      %v397 = vadd.f32 %v370, %v396
      %v398 = vpop.f32.mrf.mxu0
      %v399 = vadd.f32 %v370, %v398
      %400 = vdwg.mxu0
      %vm401 = vcmask 64512
      %v402 = vsel %vm401, %v397, -inf
      %403 = vmax.xlane.f32.xlu0 %v402
      %v404 = vpop.xlane.xlu0 %403
      %v405 = vsel %vm401, %v399, -inf
      %406 = vmax.xlane.f32.xlu0 %v405
      %v407 = vpop.xlane.xlu0 %406
      %v408 = vsub.f32 %v397, %v404
      %v409 = vsub.f32 %v399, %v407
      %v410 = vmul.f32 %v408, 1.442695
      %v411 = vpow.pop %v410
      %v412 = vmul.f32 %v409, 1.442695
      %v413 = vpow.pop %v412
      %v414 = vsel %vm401, %v411, 0.0
      %415 = vadd.xlane.f32.xlu0 %v414
      %v416 = vpop.xlane.xlu0 %415
      %v417 = vsel %vm401, %v413, 0.0
      %418 = vadd.xlane.f32.xlu0 %v417
      %v419 = vpop.xlane.xlu0 %418
      %v420 = vrcp.pop %v416
      %v421 = vmul.f32 %v416, %v420
      %v422 = vsub.f32 1.0, %v421
      %v423 = vmul.f32 %v420, %v422
      %v424 = vadd.f32 %v420, %v423
      %vm425 = vweird.f32 %v416
      %vm426 = vweird.f32 %v420
      %vm427 = vmor %vm425, %vm426
      %v428 = vsel %vm427, %v420, %v424
      %v429 = vand.u32 2147483647, %v416
      %vm430 = vcmp.eq.f32.partialorder %v429, 8.507059e+37
      %v431 = vand.u32 %v416, 2147483648
      %v432 = vor.u32 1.1754944e-38, %v431
      %v433 = vsel %vm430, %v432, %v428
      %v434 = vmul.f32 1.0, %v433
      %v435 = vrcp.pop %v419
      %v436 = vmul.f32 %v419, %v435
      %v437 = vsub.f32 1.0, %v436
      %v438 = vmul.f32 %v435, %v437
      %v439 = vadd.f32 %v435, %v438
      %vm440 = vweird.f32 %v419
      %vm441 = vweird.f32 %v435
      %vm442 = vmor %vm440, %vm441
      %v443 = vsel %vm442, %v435, %v439
      %v444 = vand.u32 2147483647, %v419
      %vm445 = vcmp.eq.f32.partialorder %v444, 8.507059e+37
      %v446 = vand.u32 %v419, 2147483648
      %v447 = vor.u32 1.1754944e-38, %v446
      %v448 = vsel %vm445, %v447, %v443
      %v449 = vmul.f32 1.0, %v448
      %v450 = vmul.f32 %v411, %v434
      %v451 = vmul.f32 %v413, %v449
      %452 = vst.msk [vmem:[%s280] sm:$0xff] %vm401, %v450
      %453 = vst.msk [vmem:[%s280 + $0x8] sm:$0xff] %vm401, %v451
      %s454 = smul.u32 2, %s18
      %p455 = scmp.lt.s32.totalorder %s454, 3
      %s456 = scalar_select %p455, %s454, 3
      %s457 = smul.addr %s456, 8
      %s458 = scalar_lea.vmem %s7, %s457
      // Predicated region
      $region49: #{tpu_custom_call.1} parent=47 // pred_check
        %p459 = pneg %p188
      $region50: #{tpu_custom_call.1} parent=47 // pred_check_branch
        %461 = sbr.rel (%p459) target = $region52
      $region51: #{tpu_custom_call.1} parent=47 // pred_region
        %s462 = smul.u32 2, %s18
      $region52: #{tpu_custom_call.1} parent=47 // pred_fallthru
        _
    $region48: #{tpu_custom_call.1} parent=5 // pred_fallthru
      _
    %p463 = scmp.le.s32.totalorder 2, %s13
    // Predicated region
    $region53: #{tpu_custom_call.1} parent=5 // pred_check
      %p464 = pneg %p463
    $region54: #{tpu_custom_call.1} parent=5 // pred_check_branch
      %466 = sbr.rel (%p464) target = $region56
    $region55: #{tpu_custom_call.1} parent=5 // pred_region
      %s467 = ssub.s32 %s13, 2
      // Predicated region
      $region57: #{tpu_custom_call.1} parent=55 // pred_check
        %p468 = pneg %p194
      $region58: #{tpu_custom_call.1} parent=55 // pred_check_branch
        %470 = sbr.rel (%p468) target = $region60
      $region59: #{tpu_custom_call.1} parent=55 // pred_region
        %s471 = smul.u32 2, %s19
        %p472 = scmp.lt.s32.totalorder %s471, 3
        %s473 = scalar_select %p472, %s471, 3
        %s474 = smul.addr %s473, 8
        %s475 = scalar_lea.vmem %s7, %s474
      $region60: #{tpu_custom_call.1} parent=55 // pred_fallthru
        _
    $region56: #{tpu_custom_call.1} parent=5 // pred_fallthru
      _
  $region6: #{tpu_custom_call.1} parent=0 // loop_footer
    %s17 = sadd.s32 1, %s13
  $region7: #{tpu_custom_call.1} parent=0 // loop_footer_branch
    %12 = sbr.rel target = $region3
  $region8: #{tpu_custom_call.1} parent=0 // loop_exit
    _

// kernel: tpu_custom_call.1
$region0: #{tpu_custom_call.1}
  #allocation0 [shape = 'u32[]', space=smem, size = 0x4, offset = 0x4, fixed_abs, tag = 'smem constant byte address 0x4 - core index']
  #allocation1 [shape = 'u32[72,128]{1,0:T(1,128)}', space=vmem, size = 0x9000, scoped, tag = 'internal scratch']
  %s0 = inlined_call_operand.vmem [shape: f32[32,16], index: 0, kind: input, shape index: {}]
  %s1 = inlined_call_operand.vmem [shape: bf16[16,32], index: 1, kind: input, shape index: {}]
  %s2 = inlined_call_operand.vmem [shape: f32[1,32], index: 2, kind: input, shape index: {}]
  %s3 = inlined_call_operand.vmem [shape: bf16[32,32], index: 3, kind: input, shape index: {}]
  %s4 = inlined_call_operand.vmem [shape: f32[1,32], index: 4, kind: input, shape index: {}]
  %s5 = inlined_call_operand.vmem [shape: bf16[32,8], index: 5, kind: input, shape index: {}]
  %s6 = inlined_call_operand.vmem [shape: f32[1,8], index: 6, kind: input, shape index: {}]
  %s7 = inlined_call_operand.vmem [shape: f32[32,8], index: 7, kind: output, shape index: {}]
  %s8 = sld [smem:[#allocation0]]
  $region61: #{tpu_custom_call.1} parent=0
    _
  %s10 = ssub.s32 1, %s8
  %s11 = scalar_select 0, %s10, %s8
  loop: start=0, step=1, limit=4
  $region2: #{tpu_custom_call.1} parent=0 // loop_pre_header
    _
  $region3: #{tpu_custom_call.1} parent=0 // loop_header
    %s13 = sphi 0, %s17
    %p14 = scmp.ge.s32.totalorder %s13, 4
    %s23 = sphi 0, %s25
    %s26 = sphi 0, %s23
    %s27 = sphi 0, %s26
    %s43 = sphi 0, %s27
    %s47 = sphi 0, %s47
    %s49 = sphi 0, %s47
    %s50 = sphi 0, %s49
    %s64 = sphi 0, %s50
    %s68 = sphi 0, %s68
    %s70 = sphi 0, %s68
    %s71 = sphi 0, %s70
    %s85 = sphi 0, %s71
    %s89 = sphi 0, %s89
    %s91 = sphi 0, %s89
    %s92 = sphi 0, %s91
    %s106 = sphi 0, %s92
    %s110 = sphi 0, %s110
    %s112 = sphi 0, %s110
    %s113 = sphi 0, %s112
    %s127 = sphi 0, %s113
    %s131 = sphi 0, %s131
    %s133 = sphi 0, %s131
    %s134 = sphi 0, %s133
    %s148 = sphi 0, %s134
    %s152 = sphi 0, %s152
    %s154 = sphi 0, %s152
    %s155 = sphi 0, %s154
    %s169 = sphi 0, %s155
    %s175 = sphi 0, %s177
    %s178 = sphi 0, %s175
    %s179 = sphi 0, %s178
    %s195 = sphi 0, %s179
  $region4: #{tpu_custom_call.1} parent=0 // loop_header_branch
    %16 = sbr.rel (%p14) target = $region8
  $region5: #{tpu_custom_call.1} parent=0 // loop_body
    %s18 = ssub.s32 %s13, 1
    %s19 = ssub.s32 %s13, 2
    %s20 = sadd.s32 %s13, 1
    %s21 = ssub.s32 %s13, %s20
    %p22 = scmp.eq.s32.totalorder %s21, 0
    %s24 = sadd.s32 %s23, 1
    %s25 = scalar_select %p22, %s23, %s24
    %p28 = pneg %p22
    %p29 = scmp.eq.s32.totalorder %s13, 1
    %p30 = por %p28, %p29
    %p31 = scmp.ne.s32.totalorder %s23, %s26
    %p32 = scmp.eq.s32.totalorder %s13, 0
    %p33 = por %p31, %p32
    %p34 = scmp.ne.s32.totalorder %s23, %s26
    %p35 = scmp.eq.s32.totalorder %s18, 1
    %p36 = por %p34, %p35
    %p37 = scmp.ne.s32.totalorder %s26, %s27
    %p38 = scmp.eq.s32.totalorder %s18, 0
    %p39 = por %p37, %p38
    %p40 = scmp.ne.s32.totalorder %s26, %s27
    %p41 = scmp.eq.s32.totalorder %s19, 1
    %p42 = por %p40, %p41
    %p44 = scmp.ne.s32.totalorder %s27, %s43
    %p45 = scmp.eq.s32.totalorder %s19, 0
    %p46 = por %p44, %p45
    %s48 = sadd.s32 %s47, 1
    %p51 = scmp.eq.s32.totalorder %s13, 1
    %p52 = scmp.ne.s32.totalorder %s47, %s49
    %p53 = scmp.eq.s32.totalorder %s13, 0
    %p54 = por %p52, %p53
    %p55 = scmp.ne.s32.totalorder %s47, %s49
    %p56 = scmp.eq.s32.totalorder %s18, 1
    %p57 = por %p55, %p56
    %p58 = scmp.ne.s32.totalorder %s49, %s50
    %p59 = scmp.eq.s32.totalorder %s18, 0
    %p60 = por %p58, %p59
    %p61 = scmp.ne.s32.totalorder %s49, %s50
    %p62 = scmp.eq.s32.totalorder %s19, 1
    %p63 = por %p61, %p62
    %p65 = scmp.ne.s32.totalorder %s50, %s64
    %p66 = scmp.eq.s32.totalorder %s19, 0
    %p67 = por %p65, %p66
    %s69 = sadd.s32 %s68, 1
    %p72 = scmp.eq.s32.totalorder %s13, 1
    %p73 = scmp.ne.s32.totalorder %s68, %s70
    %p74 = scmp.eq.s32.totalorder %s13, 0
    %p75 = por %p73, %p74
    %p76 = scmp.ne.s32.totalorder %s68, %s70
    %p77 = scmp.eq.s32.totalorder %s18, 1
    %p78 = por %p76, %p77
    %p79 = scmp.ne.s32.totalorder %s70, %s71
    %p80 = scmp.eq.s32.totalorder %s18, 0
    %p81 = por %p79, %p80
    %p82 = scmp.ne.s32.totalorder %s70, %s71
    %p83 = scmp.eq.s32.totalorder %s19, 1
    %p84 = por %p82, %p83
    %p86 = scmp.ne.s32.totalorder %s71, %s85
    %p87 = scmp.eq.s32.totalorder %s19, 0
    %p88 = por %p86, %p87
    %s90 = sadd.s32 %s89, 1
    %p93 = scmp.eq.s32.totalorder %s13, 1
    %p94 = scmp.ne.s32.totalorder %s89, %s91
    %p95 = scmp.eq.s32.totalorder %s13, 0
    %p96 = por %p94, %p95
    %p97 = scmp.ne.s32.totalorder %s89, %s91
    %p98 = scmp.eq.s32.totalorder %s18, 1
    %p99 = por %p97, %p98
    %p100 = scmp.ne.s32.totalorder %s91, %s92
    %p101 = scmp.eq.s32.totalorder %s18, 0
    %p102 = por %p100, %p101
    %p103 = scmp.ne.s32.totalorder %s91, %s92
    %p104 = scmp.eq.s32.totalorder %s19, 1
    %p105 = por %p103, %p104
    %p107 = scmp.ne.s32.totalorder %s92, %s106
    %p108 = scmp.eq.s32.totalorder %s19, 0
    %p109 = por %p107, %p108
    %s111 = sadd.s32 %s110, 1
    %p114 = scmp.eq.s32.totalorder %s13, 1
    %p115 = scmp.ne.s32.totalorder %s110, %s112
    %p116 = scmp.eq.s32.totalorder %s13, 0
    %p117 = por %p115, %p116
    %p118 = scmp.ne.s32.totalorder %s110, %s112
    %p119 = scmp.eq.s32.totalorder %s18, 1
    %p120 = por %p118, %p119
    %p121 = scmp.ne.s32.totalorder %s112, %s113
    %p122 = scmp.eq.s32.totalorder %s18, 0
    %p123 = por %p121, %p122
    %p124 = scmp.ne.s32.totalorder %s112, %s113
    %p125 = scmp.eq.s32.totalorder %s19, 1
    %p126 = por %p124, %p125
    %p128 = scmp.ne.s32.totalorder %s113, %s127
    %p129 = scmp.eq.s32.totalorder %s19, 0
    %p130 = por %p128, %p129
    %s132 = sadd.s32 %s131, 1
    %p135 = scmp.eq.s32.totalorder %s13, 1
    %p136 = scmp.ne.s32.totalorder %s131, %s133
    %p137 = scmp.eq.s32.totalorder %s13, 0
    %p138 = por %p136, %p137
    %p139 = scmp.ne.s32.totalorder %s131, %s133
    %p140 = scmp.eq.s32.totalorder %s18, 1
    %p141 = por %p139, %p140
    %p142 = scmp.ne.s32.totalorder %s133, %s134
    %p143 = scmp.eq.s32.totalorder %s18, 0
    %p144 = por %p142, %p143
    %p145 = scmp.ne.s32.totalorder %s133, %s134
    %p146 = scmp.eq.s32.totalorder %s19, 1
    %p147 = por %p145, %p146
    %p149 = scmp.ne.s32.totalorder %s134, %s148
    %p150 = scmp.eq.s32.totalorder %s19, 0
    %p151 = por %p149, %p150
    %s153 = sadd.s32 %s152, 1
    %p156 = scmp.eq.s32.totalorder %s13, 1
    %p157 = scmp.ne.s32.totalorder %s152, %s154
    %p158 = scmp.eq.s32.totalorder %s13, 0
    %p159 = por %p157, %p158
    %p160 = scmp.ne.s32.totalorder %s152, %s154
    %p161 = scmp.eq.s32.totalorder %s18, 1
    %p162 = por %p160, %p161
    %p163 = scmp.ne.s32.totalorder %s154, %s155
    %p164 = scmp.eq.s32.totalorder %s18, 0
    %p165 = por %p163, %p164
    %p166 = scmp.ne.s32.totalorder %s154, %s155
    %p167 = scmp.eq.s32.totalorder %s19, 1
    %p168 = por %p166, %p167
    %p170 = scmp.ne.s32.totalorder %s155, %s169
    %p171 = scmp.eq.s32.totalorder %s19, 0
    %p172 = por %p170, %p171
    %s173 = ssub.s32 %s13, %s20
    %p174 = scmp.eq.s32.totalorder %s173, 0
    %s176 = sadd.s32 %s175, 1
    %s177 = scalar_select %p174, %s175, %s176
    %p180 = pneg %p174
    %p181 = scmp.eq.s32.totalorder %s13, 1
    %p182 = por %p180, %p181
    %p183 = scmp.ne.s32.totalorder %s175, %s178
    %p184 = scmp.eq.s32.totalorder %s13, 0
    %p185 = por %p183, %p184
    %p186 = scmp.ne.s32.totalorder %s175, %s178
    %p187 = scmp.eq.s32.totalorder %s18, 1
    %p188 = por %p186, %p187
    %p189 = scmp.ne.s32.totalorder %s178, %s179
    %p190 = scmp.eq.s32.totalorder %s18, 0
    %p191 = por %p189, %p190
    %p192 = scmp.ne.s32.totalorder %s178, %s179
    %p193 = scmp.eq.s32.totalorder %s19, 1
    %p194 = por %p192, %p193
    %p196 = scmp.ne.s32.totalorder %s179, %s195
    %p197 = scmp.eq.s32.totalorder %s19, 0
    %p198 = por %p196, %p197
    %p199 = scmp.le.s32.totalorder 1, %s13
    %p200 = scmp.lt.s32.totalorder %s13, 3
    %p201 = pnand %p199, %p200
    %p202 = pneg %p201
    // Predicated region
    $region9: #{tpu_custom_call.1} parent=5 // pred_check
      _
    $region10: #{tpu_custom_call.1} parent=5 // pred_check_branch
      %204 = sbr.rel (%p201) target = $region12
    $region11: #{tpu_custom_call.1} parent=5 // pred_region
      %s205 = ssub.s32 %s13, 1
      // Predicated region
      $region13: #{tpu_custom_call.1} parent=11 // pred_check
        %p206 = pneg %p60
      $region14: #{tpu_custom_call.1} parent=11 // pred_check_branch
        %208 = sbr.rel (%p206) target = $region16
      $region15: #{tpu_custom_call.1} parent=11 // pred_region
        _
      $region16: #{tpu_custom_call.1} parent=11 // pred_fallthru
        _
      // Predicated region
      $region17: #{tpu_custom_call.1} parent=11 // pred_check
        %p209 = pneg %p81
      $region18: #{tpu_custom_call.1} parent=11 // pred_check_branch
        %211 = sbr.rel (%p209) target = $region20
      $region19: #{tpu_custom_call.1} parent=11 // pred_region
        _
      $region20: #{tpu_custom_call.1} parent=11 // pred_fallthru
        _
      // Predicated region
      $region21: #{tpu_custom_call.1} parent=11 // pred_check
        %p212 = pneg %p102
      $region22: #{tpu_custom_call.1} parent=11 // pred_check_branch
        %214 = sbr.rel (%p212) target = $region24
      $region23: #{tpu_custom_call.1} parent=11 // pred_region
        _
      $region24: #{tpu_custom_call.1} parent=11 // pred_fallthru
        _
      // Predicated region
      $region25: #{tpu_custom_call.1} parent=11 // pred_check
        %p215 = pneg %p123
      $region26: #{tpu_custom_call.1} parent=11 // pred_check_branch
        %217 = sbr.rel (%p215) target = $region28
      $region27: #{tpu_custom_call.1} parent=11 // pred_region
        _
      $region28: #{tpu_custom_call.1} parent=11 // pred_fallthru
        _
      // Predicated region
      $region29: #{tpu_custom_call.1} parent=11 // pred_check
        %p218 = pneg %p144
      $region30: #{tpu_custom_call.1} parent=11 // pred_check_branch
        %220 = sbr.rel (%p218) target = $region32
      $region31: #{tpu_custom_call.1} parent=11 // pred_region
        _
      $region32: #{tpu_custom_call.1} parent=11 // pred_fallthru
        _
      // Predicated region
      $region33: #{tpu_custom_call.1} parent=11 // pred_check
        %p221 = pneg %p165
      $region34: #{tpu_custom_call.1} parent=11 // pred_check_branch
        %223 = sbr.rel (%p221) target = $region36
      $region35: #{tpu_custom_call.1} parent=11 // pred_region
        _
      $region36: #{tpu_custom_call.1} parent=11 // pred_fallthru
        _
    $region12: #{tpu_custom_call.1} parent=5 // pred_fallthru
      _
    %p224 = scmp.lt.s32.totalorder %s13, 2
    // Predicated region
    $region37: #{tpu_custom_call.1} parent=5 // pred_check
      %p225 = pneg %p224
    $region38: #{tpu_custom_call.1} parent=5 // pred_check_branch
      %227 = sbr.rel (%p225) target = $region40
    $region39: #{tpu_custom_call.1} parent=5 // pred_region
      // Predicated region
      $region41: #{tpu_custom_call.1} parent=39 // pred_check
        %p228 = pneg %p33
      $region42: #{tpu_custom_call.1} parent=39 // pred_check_branch
        %230 = sbr.rel (%p228) target = $region44
      $region43: #{tpu_custom_call.1} parent=39 // pred_region
        %s231 = smul.u32 2, %s13
        %p232 = scmp.lt.s32.totalorder %s231, 3
        %s233 = scalar_select %p232, %s231, 3
        %s234 = smul.addr %s233, 8
        %s235 = scalar_lea.vmem %s0, %s234
        %s236 = smul.u32 2, %s13
      $region44: #{tpu_custom_call.1} parent=39 // pred_fallthru
        _
    $region40: #{tpu_custom_call.1} parent=5 // pred_fallthru
      _
    %p237 = scmp.le.s32.totalorder 1, %s13
    %p238 = scmp.lt.s32.totalorder %s13, 3
    %p239 = pnand %p237, %p238
    %p240 = pneg %p239
    // Predicated region
    $region45: #{tpu_custom_call.1} parent=5 // pred_check
      _
    $region46: #{tpu_custom_call.1} parent=5 // pred_check_branch
      %242 = sbr.rel (%p239) target = $region48
    $region47: #{tpu_custom_call.1} parent=5 // pred_region
      %s243 = ssub.s32 %s13, 1
      %s244 = smul.u32 2, %s18
      %p245 = scmp.lt.s32.totalorder %s244, 3
      %s246 = scalar_select %p245, %s244, 3
      %s247 = smul.addr %s246, 8
      %s248 = scalar_lea.vmem %s0, %s247
      %p249 = pneg %p39
      %p250 = pneg %p36
      %p251 = pneg %p60
      %p252 = pneg %p57
      %p253 = pneg %p81
      %p254 = pneg %p78
      %p255 = pneg %p102
      %p256 = pneg %p99
      %p257 = pneg %p123
      %p258 = pneg %p120
      %p259 = pneg %p144
      %p260 = pneg %p141
      %p261 = pneg %p165
      %p262 = pneg %p162
      %p263 = pneg %p191
      %p264 = pneg %p188
      %s265 = smul.u32 2, %s18
      %p266 = scmp.lt.s32.totalorder %s265, 3
      %s267 = scalar_select %p266, %s265, 3
      %s268 = smul.addr %s267, 8
      %s269 = scalar_lea.vmem %s7, %s268
      %s270 = smul.u32 2, %s18
      %p271 = scmp.lt.s32.totalorder %s270, 3
      %s272 = scalar_select %p271, %s270, 3
      %s273 = smul.addr %s272, 8
      %s274 = scalar_lea.vmem %s0, %s273
      %s275 = smul.u32 2, %s18
      %s276 = smul.u32 2, %s18
      %p277 = scmp.lt.s32.totalorder %s276, 3
      %s278 = scalar_select %p277, %s276, 3
      %s279 = smul.addr %s278, 8
      %s280 = scalar_lea.vmem %s7, %s279
      %s281 = smul.u32 2, %s18
      %v283 = vld [vmem:[%s274] sm:$0xff]
      %v284 = vld [vmem:[%s274 + $0x8] sm:$0xff]
      %v285 = vpack.c.bf16 %v284, %v283
      %v286 = vld [vmem:[%s1] sm:$0xf]
      %v287 = vld [vmem:[%s1 + $0x4] sm:$0xf]
      %v288 = vld [vmem:[%s2] sm:$0x1]
      %v290 = vperm.slane %v288, 0
      %v294 = vunpack.c.l.b16 %v286
      %v295 = vunpack.c.l.b16 %v287
      %v296 = vpack.c.b16 %v295, %v294
      %vm298 = vcmask 130048
      %v300 = vsel %vm298, %v285, 0
      %302 = vmatpush.bf16.msra.mxu0 0
      %303 = vmatpush.bf16.msra.mxu0 0
      %304 = vmatpush.bf16.msra.mxu0 0
      %305 = vmatpush.bf16.msra.mxu0 0
      %306 = vmatpush.bf16.msra.mxu0 0
      %307 = vmatpush.bf16.msra.mxu0 0
      %308 = vmatpush.bf16.msra.mxu0 0
      %309 = vmatpush.bf16.msra.mxu0 %v296
      %310 = vmatmul.bf16.gmra.mxu0 %v300
      %v311 = vpop.f32.mrf.mxu0
      %v312 = vadd.f32 %v290, %v311
      %v313 = vpop.f32.mrf.mxu0
      %v314 = vadd.f32 %v290, %v313
      %315 = vdwg.mxu0
      %v316 = vmul.f32 %v312, 0.01
      %v317 = vmul.f32 %v314, 0.01
      %v318 = vmax.f32 %v312, %v316
      %v319 = vmax.f32 %v314, %v317
      %v320 = vpack.c.bf16 %v319, %v318
      %v321 = vld [vmem:[%s3] sm:$0xf]
      %v322 = vld [vmem:[%s3 + $0x4] sm:$0xf]
      %v323 = vld [vmem:[%s3 + $0x8] sm:$0xf]
      %v324 = vld [vmem:[%s3 + $0xc] sm:$0xf]
      %v325 = vld [vmem:[%s4] sm:$0x1]
      %v327 = vperm.slane %v325, 0
      %v333 = vunpack.c.l.b16 %v321
      %v334 = vunpack.c.l.b16 %v322
      %v335 = vunpack.c.l.b16 %v323
      %v336 = vunpack.c.l.b16 %v324
      %v337 = vpack.c.b16 %v334, %v333
      %v338 = vpack.c.b16 %v336, %v335
      %vm341 = vcmask 261120
      %v343 = vsel %vm341, %v320, 0
      %345 = vmatpush.bf16.msra.mxu0 0
      %346 = vmatpush.bf16.msra.mxu0 0
      %347 = vmatpush.bf16.msra.mxu0 0
      %348 = vmatpush.bf16.msra.mxu0 0
      %349 = vmatpush.bf16.msra.mxu0 0
      %350 = vmatpush.bf16.msra.mxu0 0
      %351 = vmatpush.bf16.msra.mxu0 %v338
      %352 = vmatpush.bf16.msra.mxu0 %v337
      %353 = vmatmul.bf16.gmra.mxu0 %v343
      %v354 = vpop.f32.mrf.mxu0
      %v355 = vadd.f32 %v327, %v354
      %v356 = vpop.f32.mrf.mxu0
      %v357 = vadd.f32 %v327, %v356
      %358 = vdwg.mxu0
      %v359 = vmul.f32 %v355, 0.01
      %v360 = vmul.f32 %v357, 0.01
      %v361 = vmax.f32 %v355, %v359
      %v362 = vmax.f32 %v357, %v360
      %v363 = vpack.c.bf16 %v362, %v361
      %v364 = vld [vmem:[%s5] sm:$0xf]
      %v365 = vld [vmem:[%s5 + $0x4] sm:$0xf]
      %v366 = vld [vmem:[%s5 + $0x8] sm:$0xf]
      %v367 = vld [vmem:[%s5 + $0xc] sm:$0xf]
      %v368 = vld [vmem:[%s6] sm:$0x1]
      %v370 = vperm.slane %v368, 0
      %v376 = vunpack.c.l.b16 %v364
      %v377 = vunpack.c.l.b16 %v365
      %v378 = vunpack.c.l.b16 %v366
      %v379 = vunpack.c.l.b16 %v367
      %v380 = vpack.c.b16 %v377, %v376
      %v381 = vpack.c.b16 %v379, %v378
      %v385 = vsel %vm341, %v363, 0
      %387 = vmatpush.bf16.msra.mxu0 0
      %388 = vmatpush.bf16.msra.mxu0 0
      %389 = vmatpush.bf16.msra.mxu0 0
      %390 = vmatpush.bf16.msra.mxu0 0
      %391 = vmatpush.bf16.msra.mxu0 0
      %392 = vmatpush.bf16.msra.mxu0 0
      %393 = vmatpush.bf16.msra.mxu0 %v381
      %394 = vmatpush.bf16.msra.mxu0 %v380
      %395 = vmatmul.bf16.gmra.mxu0 %v385
      %v396 = vpop.f32.mrf.mxu0
      %v397 = vadd.f32 %v370, %v396
      %v398 = vpop.f32.mrf.mxu0
      %v399 = vadd.f32 %v370, %v398
      %400 = vdwg.mxu0
      %vm401 = vcmask 64512
      %v402 = vsel %vm401, %v397, -inf
      %403 = vmax.xlane.f32.xlu0 %v402
      %v404 = vpop.xlane.xlu0 %403
      %v405 = vsel %vm401, %v399, -inf
      %406 = vmax.xlane.f32.xlu0 %v405
      %v407 = vpop.xlane.xlu0 %406
      %v408 = vsub.f32 %v397, %v404
      %v409 = vsub.f32 %v399, %v407
      %v410 = vmul.f32 %v408, 1.442695
      %v411 = vpow.pop %v410
      %v412 = vmul.f32 %v409, 1.442695
      %v413 = vpow.pop %v412
      %v414 = vsel %vm401, %v411, 0.0
      %415 = vadd.xlane.f32.xlu0 %v414
      %v416 = vpop.xlane.xlu0 %415
      %v417 = vsel %vm401, %v413, 0.0
      %418 = vadd.xlane.f32.xlu0 %v417
      %v419 = vpop.xlane.xlu0 %418
      %v420 = vrcp.pop %v416
      %v421 = vmul.f32 %v416, %v420
      %v422 = vsub.f32 1.0, %v421
      %v423 = vmul.f32 %v420, %v422
      %v424 = vadd.f32 %v420, %v423
      %vm425 = vweird.f32 %v416
      %vm426 = vweird.f32 %v420
      %vm427 = vmor %vm425, %vm426
      %v428 = vsel %vm427, %v420, %v424
      %v429 = vand.u32 2147483647, %v416
      %vm430 = vcmp.eq.f32.partialorder %v429, 8.507059e+37
      %v431 = vand.u32 %v416, 2147483648
      %v432 = vor.u32 1.1754944e-38, %v431
      %v433 = vsel %vm430, %v432, %v428
      %v434 = vmul.f32 1.0, %v433
      %v435 = vrcp.pop %v419
      %v436 = vmul.f32 %v419, %v435
      %v437 = vsub.f32 1.0, %v436
      %v438 = vmul.f32 %v435, %v437
      %v439 = vadd.f32 %v435, %v438
      %vm440 = vweird.f32 %v419
      %vm441 = vweird.f32 %v435
      %vm442 = vmor %vm440, %vm441
      %v443 = vsel %vm442, %v435, %v439
      %v444 = vand.u32 2147483647, %v419
      %vm445 = vcmp.eq.f32.partialorder %v444, 8.507059e+37
      %v446 = vand.u32 %v419, 2147483648
      %v447 = vor.u32 1.1754944e-38, %v446
      %v448 = vsel %vm445, %v447, %v443
      %v449 = vmul.f32 1.0, %v448
      %v450 = vmul.f32 %v411, %v434
      %v451 = vmul.f32 %v413, %v449
      %452 = vst.msk [vmem:[%s280] sm:$0xff] %vm401, %v450
      %453 = vst.msk [vmem:[%s280 + $0x8] sm:$0xff] %vm401, %v451
      %s454 = smul.u32 2, %s18
      %p455 = scmp.lt.s32.totalorder %s454, 3
      %s456 = scalar_select %p455, %s454, 3
      %s457 = smul.addr %s456, 8
      %s458 = scalar_lea.vmem %s7, %s457
      // Predicated region
      $region49: #{tpu_custom_call.1} parent=47 // pred_check
        %p459 = pneg %p188
      $region50: #{tpu_custom_call.1} parent=47 // pred_check_branch
        %461 = sbr.rel (%p459) target = $region52
      $region51: #{tpu_custom_call.1} parent=47 // pred_region
        %s462 = smul.u32 2, %s18
      $region52: #{tpu_custom_call.1} parent=47 // pred_fallthru
        _
    $region48: #{tpu_custom_call.1} parent=5 // pred_fallthru
      _
    %p463 = scmp.le.s32.totalorder 2, %s13
    // Predicated region
    $region53: #{tpu_custom_call.1} parent=5 // pred_check
      %p464 = pneg %p463
    $region54: #{tpu_custom_call.1} parent=5 // pred_check_branch
      %466 = sbr.rel (%p464) target = $region56
    $region55: #{tpu_custom_call.1} parent=5 // pred_region
      %s467 = ssub.s32 %s13, 2
      // Predicated region
      $region57: #{tpu_custom_call.1} parent=55 // pred_check
        %p468 = pneg %p194
      $region58: #{tpu_custom_call.1} parent=55 // pred_check_branch
        %470 = sbr.rel (%p468) target = $region60
      $region59: #{tpu_custom_call.1} parent=55 // pred_region
        %s471 = smul.u32 2, %s19
        %p472 = scmp.lt.s32.totalorder %s471, 3
        %s473 = scalar_select %p472, %s471, 3
        %s474 = smul.addr %s473, 8
        %s475 = scalar_lea.vmem %s7, %s474
      $region60: #{tpu_custom_call.1} parent=55 // pred_fallthru
        _
    $region56: #{tpu_custom_call.1} parent=5 // pred_fallthru
      _
  $region6: #{tpu_custom_call.1} parent=0 // loop_footer
    %s17 = sadd.s32 1, %s13
  $region7: #{tpu_custom_call.1} parent=0 // loop_footer_branch
    %12 = sbr.rel target = $region3
  $region8: #{tpu_custom_call.1} parent=0 // loop_exit
    _

</llo_original>
